<compile_context>
chip_gen: v7x
topology: tpu7x:2x2x1
jax: 0.10.0
libtpu: 0.0.40
codegen_flags: <defaults>
</compile_context>

<pallas_src>
import jax
import jax.numpy as jnp
from jax import lax
from jax.experimental import pallas as pl
from jax.experimental.pallas import tpu as pltpu


def _round_up(x, m):
    return ((x + m - 1) // m) * m


def _dqn_kernel(s_ref, a_ref, w1s_ref, w1a_ref, w2_ref, bw_ref, b3_ref, out_ref):
    mm_dt = w2_ref.dtype                      # matmul input dtype (f32 or bf16)
    b1 = bw_ref[0:1, :]                       # (1, Hp) packed biases / w3
    b2 = bw_ref[1:2, :]
    w3 = bw_ref[2:3, :]

    # fc1: split state/action matmuls (concat done "virtually", K is tiny).
    h1 = jnp.dot(s_ref[...].astype(mm_dt), w1s_ref[...],
                 preferred_element_type=jnp.float32)
    h1 = h1 + jnp.dot(a_ref[...].astype(mm_dt), w1a_ref[...],
                      preferred_element_type=jnp.float32)
    h1 = jnp.maximum(h1 + b1, 0.0)            # f32 VPU (v5e-safe)

    # fc2: (TB, Hp) @ (Hp, Hp)
    h2 = jnp.dot(h1.astype(mm_dt), w2_ref[...],
                 preferred_element_type=jnp.float32)
    h2 = jnp.maximum(h2 + b2, 0.0)

    # fc3 as a lane-dense (1, TB) MXU matmul: (1, Hp) x (Hp, TB) contracting Hp.
    q = lax.dot_general(w3, h2, (((1,), (1,)), ((), ())),
                        preferred_element_type=jnp.float32)      # (1, TB)
    out_ref[...] = (q + b3_ref[0])[None].astype(out_ref.dtype)   # (1, 1, TB)


def prepare_params(params, state_dim, action_dim, lane_pad=128,
                   matmul_dtype=jnp.float32):
    """One-time layout prep (do NOT call per forward pass):
       * hidden dim zero-padded to a multiple of 128 lanes (exact through ReLU),
       * w1 split into state/action halves,
       * b1 / b2 / w3 packed into a single (3, Hp) block, fc3 bias as (1,) scalar,
       * matmul weights optionally cast to bf16 (loosen tolerances if used)."""
    w1, b1, w2, b2, w3, b3 = params
    fin, h = w1.shape
    assert fin == state_dim + action_dim
    hp = _round_up(max(h, lane_pad), 128)
    f32 = jnp.float32

    w1p = jnp.zeros((fin, hp), f32).at[:, :h].set(w1.astype(f32))
    w1s = w1p[:state_dim].astype(matmul_dtype)           # (S, Hp)
    w1a = w1p[state_dim:].astype(matmul_dtype)           # (A, Hp)
    w2p = jnp.zeros((hp, hp), f32).at[:h, :h].set(w2.astype(f32)).astype(matmul_dtype)

    bw = jnp.zeros((3, hp), f32)
    bw = bw.at[0, :h].set(b1.astype(f32))
    bw = bw.at[1, :h].set(b2.astype(f32))
    bw = bw.at[2, :h].set(w3.astype(f32).reshape(-1))
    b3p = b3.astype(f32).reshape((1,))
    return (w1s, w1a, w2p, bw, b3p)


def dqn_forward(state, action, prepared_params, *, tb=2048, min_grid_steps=2):
    """state: (B, S), action: (B, A) -> (B, 1) f32 Q-values."""
    w1s, w1a, w2p, bw, b3p = prepared_params
    B, S = state.shape
    A = action.shape[1]
    Hp = w2p.shape[0]

    # Batch tile: multiple of 8 sublanes, capped at tb, and sized so the grid
    # has >= min_grid_steps iterations when possible (feeds both v7x TCs).
    tb_eff = max(8, min(tb, _round_up(pl.cdiv(B, min_grid_steps), 8)))
    b_pad = _round_up(B, tb_eff)
    if b_pad != B:           # pad only for ragged B (no unconditional copies)
        state = jnp.pad(state, ((0, b_pad - B), (0, 0)))
        action = jnp.pad(action, ((0, b_pad - B), (0, 0)))
    num_tiles = b_pad // tb_eff
    grid = (num_tiles,)

    in_specs = [
        # activations: tiled over the batch grid (auto double-buffered pipeline)
        pl.BlockSpec((tb_eff, S), lambda i: (i, 0)),
        pl.BlockSpec((tb_eff, A), lambda i: (i, 0)),
        # weights: constant block index -> VMEM-resident across all grid steps
        pl.BlockSpec((S, Hp), lambda i: (0, 0)),
        pl.BlockSpec((A, Hp), lambda i: (0, 0)),
        pl.BlockSpec((Hp, Hp), lambda i: (0, 0)),
        pl.BlockSpec((3, Hp), lambda i: (0, 0)),     # packed b1/b2/w3
        # fc3 bias: scalar in SMEM
        pl.BlockSpec(memory_space=pltpu.MemorySpace.SMEM),
    ]
    # Lane-dense output: each grid step writes a full (1, 1, TB) row.
    out_spec = pl.BlockSpec((1, 1, tb_eff), lambda i: (i, 0, 0))
    out_shape = jax.ShapeDtypeStruct((num_tiles, 1, tb_eff), jnp.float32)

    wbytes = jnp.dtype(w2p.dtype).itemsize
    cost = pl.CostEstimate(
        flops=2 * B * ((S + A) * Hp + Hp * Hp + Hp),
        transcendentals=0,
        bytes_accessed=(B * (S + A) + B) * 4
                       + ((S + A) * Hp + Hp * Hp) * wbytes + 3 * Hp * 4 + 4,
    )

    q = pl.pallas_call(
        _dqn_kernel,
        out_shape=out_shape,
        grid=grid,
        in_specs=in_specs,
        out_specs=out_spec,
        compiler_params=pltpu.CompilerParams(
            dimension_semantics=("parallel",)),   # shards batch across v7x's 2 TCs
        cost_estimate=cost,
    )(state, action, w1s, w1a, w2p, bw, b3p)

    return q.reshape(b_pad)[:B].reshape(B, 1)


def init_dqn_params(key, state_dim, action_dim, hidden_dim=64):
    """Deterministic init mimicking nn.Linear's uniform(-1/sqrt(fan_in), ...).
    Weights stored as (in_features, out_features)."""
    def linear(k, fan_in, fan_out):
        kw, kb = jax.random.split(k)
        bound = 1.0 / (fan_in ** 0.5)
        w = jax.random.uniform(kw, (fan_in, fan_out), jnp.float32, -bound, bound)
        b = jax.random.uniform(kb, (fan_out,), jnp.float32, -bound, bound)
        return w, b

    k1, k2, k3 = jax.random.split(key, 3)
    w1, b1 = linear(k1, state_dim + action_dim, hidden_dim)
    w2, b2 = linear(k2, hidden_dim, hidden_dim)
    w3, b3 = linear(k3, hidden_dim, 1)
    return (w1, b1, w2, b2, w3, b3)


def dqn_reference(state, action, params):
    w1, b1, w2, b2, w3, b3 = params
    x = jnp.concatenate([state, action], axis=1)
    x = jax.nn.relu(x @ w1 + b1)
    x = jax.nn.relu(x @ w2 + b2)
    return x @ w3 + b3


if __name__ == "__main__":
    # small shapes consistent with the module: state_dim=3*n_drones, one-hot actions
    batch, state_dim, action_dim, hidden_dim = 8, 12, 4, 64

    key = jax.random.PRNGKey(0)
    kp, ks, ka = jax.random.split(key, 3)
    params = init_dqn_params(kp, state_dim, action_dim, hidden_dim)
    prepared = prepare_params(params, state_dim, action_dim)   # one-time layout prep

    state = jax.random.normal(ks, (batch, state_dim), jnp.float32)
    act_idx = jax.random.randint(ka, (batch,), 0, action_dim)
    action = jax.nn.one_hot(act_idx, action_dim, dtype=jnp.float32)

    q = dqn_forward(state, action, prepared)
    q = jax.block_until_ready(q)

    q_ref = dqn_reference(state, action, params)
    assert q.shape == (batch, 1), q.shape
    assert jnp.allclose(q, q_ref, atol=1e-4, rtol=1e-4), (q, q_ref)
    print("KERNEL_OK")
</pallas_src>

<mosaic_0001>
module attributes {stable_mosaic.version = 11 : i64} {
  func.func @_dqn_kernel(%arg0: i32, %arg1: memref<8x12xf32, #tpu.memory_space<vmem>>, %arg2: memref<8x4xf32, #tpu.memory_space<vmem>>, %arg3: memref<12x128xf32, #tpu.memory_space<vmem>>, %arg4: memref<4x128xf32, #tpu.memory_space<vmem>>, %arg5: memref<128x128xf32, #tpu.memory_space<vmem>>, %arg6: memref<3x128xf32, #tpu.memory_space<vmem>>, %arg7: memref<1xf32, #tpu.memory_space<smem>>, %arg8: memref<1x1x8xf32, #tpu.memory_space<vmem>>) attributes {dimension_semantics = [#tpu.dimension_semantics<parallel>], iteration_bounds = array<i64: 1>, scalar_prefetch = 0 : i64, scratch_operands = 0 : i64, tpu.core_type = #tpu.core_type<tc>, window_params = [{transform_indices = @transform_0, window_bounds = array<i64: 8, 12>}, {transform_indices = @transform_1, window_bounds = array<i64: 8, 4>}, {pipeline_mode = #tpu.pipeline_mode<synchronous>, transform_indices = @transform_2, window_bounds = array<i64: 12, 128>}, {pipeline_mode = #tpu.pipeline_mode<synchronous>, transform_indices = @transform_3, window_bounds = array<i64: 4, 128>}, {pipeline_mode = #tpu.pipeline_mode<synchronous>, transform_indices = @transform_4, window_bounds = array<i64: 128, 128>}, {pipeline_mode = #tpu.pipeline_mode<synchronous>, transform_indices = @transform_5, window_bounds = array<i64: 3, 128>}, {transform_indices = @transform_6, window_bounds = array<i64: 1>}, {transform_indices = @transform_7, window_bounds = array<i64: 1, 1, 8>}]} {
    %c0 = arith.constant 0 : index
    %c0_0 = arith.constant 0 : index
    %0 = vector.load %arg6[%c0, %c0_0] : memref<3x128xf32, #tpu.memory_space<vmem>>, vector<1x128xf32>
    %c1 = arith.constant 1 : index
    %c0_1 = arith.constant 0 : index
    %1 = vector.load %arg6[%c1, %c0_1] : memref<3x128xf32, #tpu.memory_space<vmem>>, vector<1x128xf32>
    %c2 = arith.constant 2 : index
    %c0_2 = arith.constant 0 : index
    %2 = vector.load %arg6[%c2, %c0_2] : memref<3x128xf32, #tpu.memory_space<vmem>>, vector<1x128xf32>
    %c0_3 = arith.constant 0 : index
    %c0_4 = arith.constant 0 : index
    %3 = vector.load %arg1[%c0_3, %c0_4] : memref<8x12xf32, #tpu.memory_space<vmem>>, vector<8x12xf32>
    %c0_5 = arith.constant 0 : index
    %c0_6 = arith.constant 0 : index
    %4 = vector.load %arg3[%c0_5, %c0_6] : memref<12x128xf32, #tpu.memory_space<vmem>>, vector<12x128xf32>
    %cst = arith.constant dense<0.000000e+00> : vector<8x128xf32>
    %5 = tpu.matmul %3, %4, %cst {dimension_numbers = #tpu.dot_dimension_numbers<[1], [0], [0], [1], [0, 0, 1, 1], [], []>} : vector<8x12xf32>, vector<12x128xf32>, vector<8x128xf32> -> vector<8x128xf32>
    %c0_7 = arith.constant 0 : index
    %c0_8 = arith.constant 0 : index
    %6 = vector.load %arg2[%c0_7, %c0_8] : memref<8x4xf32, #tpu.memory_space<vmem>>, vector<8x4xf32>
    %c0_9 = arith.constant 0 : index
    %c0_10 = arith.constant 0 : index
    %7 = vector.load %arg4[%c0_9, %c0_10] : memref<4x128xf32, #tpu.memory_space<vmem>>, vector<4x128xf32>
    %cst_11 = arith.constant dense<0.000000e+00> : vector<8x128xf32>
    %8 = tpu.matmul %6, %7, %cst_11 {dimension_numbers = #tpu.dot_dimension_numbers<[1], [0], [0], [1], [0, 0, 1, 1], [], []>} : vector<8x4xf32>, vector<4x128xf32>, vector<8x128xf32> -> vector<8x128xf32>
    %9 = arith.addf %5, %8 : vector<8x128xf32>
    %10 = vector.broadcast %0 : vector<1x128xf32> to vector<8x128xf32>
    %11 = arith.addf %9, %10 : vector<8x128xf32>
    %cst_12 = arith.constant 0.000000e+00 : f32
    %12 = vector.broadcast %cst_12 : f32 to vector<8x128xf32>
    %13 = arith.maximumf %11, %12 : vector<8x128xf32>
    %c0_13 = arith.constant 0 : index
    %c0_14 = arith.constant 0 : index
    %14 = vector.load %arg5[%c0_13, %c0_14] : memref<128x128xf32, #tpu.memory_space<vmem>>, vector<128x128xf32>
    %cst_15 = arith.constant dense<0.000000e+00> : vector<8x128xf32>
    %15 = tpu.matmul %13, %14, %cst_15 {dimension_numbers = #tpu.dot_dimension_numbers<[1], [0], [0], [1], [0, 0, 1, 1], [], []>} : vector<8x128xf32>, vector<128x128xf32>, vector<8x128xf32> -> vector<8x128xf32>
    %16 = vector.broadcast %1 : vector<1x128xf32> to vector<8x128xf32>
    %17 = arith.addf %15, %16 : vector<8x128xf32>
    %cst_16 = arith.constant 0.000000e+00 : f32
    %18 = vector.broadcast %cst_16 : f32 to vector<8x128xf32>
    %19 = arith.maximumf %17, %18 : vector<8x128xf32>
    %cst_17 = arith.constant dense<0.000000e+00> : vector<1x8xf32>
    %20 = tpu.matmul %2, %19, %cst_17 {dimension_numbers = #tpu.dot_dimension_numbers<[1], [1], [0], [0], [0, 0, 1, 0], [], []>} : vector<1x128xf32>, vector<8x128xf32>, vector<1x8xf32> -> vector<1x8xf32>
    %c0_18 = arith.constant 0 : index
    %21 = memref.load %arg7[%c0_18] : memref<1xf32, #tpu.memory_space<smem>>
    %22 = vector.broadcast %21 : f32 to vector<1x8xf32>
    %23 = arith.addf %20, %22 : vector<1x8xf32>
    %24 = vector.shape_cast %23 : vector<1x8xf32> to vector<1x1x8xf32>
    %c0_19 = arith.constant 0 : index
    %c0_20 = arith.constant 0 : index
    %c0_21 = arith.constant 0 : index
    %25 = vector.load %arg8[%c0_19, %c0_20, %c0_21] : memref<1x1x8xf32, #tpu.memory_space<vmem>>, vector<1x1x8xf32>
    tpu.vector_store %arg8[%c0_19, %c0_20, %c0_21], %24 {strides = array<i32>} : memref<1x1x8xf32, #tpu.memory_space<vmem>>, vector<1x1x8xf32>,
    return
  }
  func.func @transform_0(%arg0: i32) -> (i32, i32) {
    %c0_i32 = arith.constant 0 : i32
    %c0_i32_0 = arith.constant 0 : i32
    return %arg0, %c0_i32 : i32, i32
  }
  func.func @transform_1(%arg0: i32) -> (i32, i32) {
    %c0_i32 = arith.constant 0 : i32
    %c0_i32_0 = arith.constant 0 : i32
    return %arg0, %c0_i32 : i32, i32
  }
  func.func @transform_2(%arg0: i32) -> (i32, i32) {
    %c0_i32 = arith.constant 0 : i32
    %c0_i32_0 = arith.constant 0 : i32
    %c0_i32_1 = arith.constant 0 : i32
    return %c0_i32, %c0_i32_0 : i32, i32
  }
  func.func @transform_3(%arg0: i32) -> (i32, i32) {
    %c0_i32 = arith.constant 0 : i32
    %c0_i32_0 = arith.constant 0 : i32
    %c0_i32_1 = arith.constant 0 : i32
    return %c0_i32, %c0_i32_0 : i32, i32
  }
  func.func @transform_4(%arg0: i32) -> (i32, i32) {
    %c0_i32 = arith.constant 0 : i32
    %c0_i32_0 = arith.constant 0 : i32
    %c0_i32_1 = arith.constant 0 : i32
    return %c0_i32, %c0_i32_0 : i32, i32
  }
  func.func @transform_5(%arg0: i32) -> (i32, i32) {
    %c0_i32 = arith.constant 0 : i32
    %c0_i32_0 = arith.constant 0 : i32
    %c0_i32_1 = arith.constant 0 : i32
    return %c0_i32, %c0_i32_0 : i32, i32
  }
  func.func @transform_6(%arg0: i32) -> i32 {
    %c0_i32 = arith.constant 0 : i32
    %c0_i32_0 = arith.constant 0 : i32
    return %c0_i32 : i32
  }
  func.func @transform_7(%arg0: i32) -> (i32, i32, i32) {
    %c0_i32 = arith.constant 0 : i32
    %c0_i32_0 = arith.constant 0 : i32
    %c0_i32_1 = arith.constant 0 : i32
    return %arg0, %c0_i32, %c0_i32_0 : i32, i32, i32
  }
}

</mosaic_0001>

<llo_original>
// kernel: tpu_custom_call.1
$region0: #{tpu_custom_call.1}
  #allocation0 [shape = 'u32[]', space=smem, size = 0x4, offset = 0x4, fixed_abs, tag = 'smem constant byte address 0x4 - core index']
  #allocation1 [shape = 'u32[144,128]{1,0:T(1,128)}', space=vmem, size = 0x12000, scoped, tag = 'internal scratch']
  #allocation2 [shape = 'f32[1]{0:T(128)S(6)}', space=smem, size = 0x200, scoped, tag = 'scoped memory for tpu_custom_call.1']
  %s0 = inlined_call_operand.hbm [shape: f32[8,12], index: 0, kind: input, shape index: {}]
  %s1 = inlined_call_operand.vmem [shape: f32[8,4], index: 1, kind: input, shape index: {}]
  %s2 = inlined_call_operand.vmem [shape: f32[12,128], index: 2, kind: input, shape index: {}]
  %s3 = inlined_call_operand.vmem [shape: f32[4,128], index: 3, kind: input, shape index: {}]
  %s4 = inlined_call_operand.hbm [shape: f32[128,128], index: 4, kind: input, shape index: {}]
  %s5 = inlined_call_operand.vmem [shape: f32[3,128], index: 5, kind: input, shape index: {}]
  %s6 = inlined_call_operand.<no memory space> [shape: f32[1], index: 6, kind: input, shape index: {}]
  %s7 = inlined_call_operand.hbm [shape: f32[1,1,8], index: 7, kind: output, shape index: {}]
  %s8 = sld [smem:[#allocation0]]
  $region46: #{tpu_custom_call.1} parent=0
    _
  %s10 = ssub.s32 1, %s8
  %s11 = scalar_select 0, %s10, %s8
  %12 = sst [smem:[#allocation2]] %s6
  $region1: #{tpu_custom_call.1} parent=0
    #allocation3 [shape = 'u8[4096]{0}', space=vmem, size = 0x1000, scoped, tag = 'input window, operand 0, single buffered']
    #allocation4 [shape = 's32[1]{0}', space=sflag, size = 0x4, scoped, tag = 'scoped memory for tpu_custom_call.1']
    #allocation5 [shape = 's32[1]{0}', space=sflag, size = 0x4, scoped, tag = 'scoped memory for tpu_custom_call.1']
    #allocation6 [shape = 'u8[65536]{0}', space=vmem, size = 0x10000, scoped, tag = 'input window, operand 4, single buffered']
    #allocation7 [shape = 's32[1]{0}', space=sflag, size = 0x4, scoped, tag = 'scoped memory for tpu_custom_call.1']
    #allocation8 [shape = 'u8[512]{0}', space=vmem, size = 0x400, scoped, tag = 'output window, operand 0, single buffered']
    %13 = vsyncpa [#allocation4], 0
    %14 = vsyncpa [#allocation7], 0
    %15 = vsyncpa [#allocation5], 0
    // Predicated region
    $region2: #{tpu_custom_call.1} parent=1 // pred_check
      _
    $region3: #{tpu_custom_call.1} parent=1 // pred_check_branch
      %17 = sbr.rel (0) target = $region5
    $region4: #{tpu_custom_call.1} parent=1 // pred_region
      %s19 = ssub.s32 128, 128
      %20 = vsyncadd [#allocation4], %s19
      %s22 = sshll.u32 [#allocation3], 4
      %s23 = int_to_ptr.vmem [resolvable:$true] %s22
      %25 = dma.hbm_to_vmem [thread:$0]  %s0, 128, %s23, [#allocation4]
    $region5: #{tpu_custom_call.1} parent=1 // pred_fallthru
      _
    // Predicated region
    $region6: #{tpu_custom_call.1} parent=1 // pred_check
      _
    $region7: #{tpu_custom_call.1} parent=1 // pred_check_branch
      %27 = sbr.rel (0) target = $region9
    $region8: #{tpu_custom_call.1} parent=1 // pred_region
      _
    $region9: #{tpu_custom_call.1} parent=1 // pred_fallthru
      _
    // Predicated region
    $region10: #{tpu_custom_call.1} parent=1 // pred_check
      _
    $region11: #{tpu_custom_call.1} parent=1 // pred_check_branch
      %29 = sbr.rel (0) target = $region13
    $region12: #{tpu_custom_call.1} parent=1 // pred_region
      _
    $region13: #{tpu_custom_call.1} parent=1 // pred_fallthru
      _
    // Predicated region
    $region14: #{tpu_custom_call.1} parent=1 // pred_check
      _
    $region15: #{tpu_custom_call.1} parent=1 // pred_check_branch
      %31 = sbr.rel (0) target = $region17
    $region16: #{tpu_custom_call.1} parent=1 // pred_region
      _
    $region17: #{tpu_custom_call.1} parent=1 // pred_fallthru
      _
    // Predicated region
    $region18: #{tpu_custom_call.1} parent=1 // pred_check
      _
    $region19: #{tpu_custom_call.1} parent=1 // pred_check_branch
      %33 = sbr.rel (0) target = $region21
    $region20: #{tpu_custom_call.1} parent=1 // pred_region
      %s35 = ssub.s32 2048, 2048
      %36 = vsyncadd [#allocation7], %s35
      %s37 = sshll.u32 [#allocation6], 4
      %s38 = int_to_ptr.vmem [resolvable:$true] %s37
      %43 = dma.hbm_to_vmem [thread:$0]  %s4, 2048, %s38, [#allocation7], 128, 128, 8
    $region21: #{tpu_custom_call.1} parent=1 // pred_fallthru
      _
    // Predicated region
    $region22: #{tpu_custom_call.1} parent=1 // pred_check
      _
    $region23: #{tpu_custom_call.1} parent=1 // pred_check_branch
      %45 = sbr.rel (0) target = $region25
    $region24: #{tpu_custom_call.1} parent=1 // pred_region
      _
    $region25: #{tpu_custom_call.1} parent=1 // pred_fallthru
      _
    // Predicated region
    $region26: #{tpu_custom_call.1} parent=1 // pred_check
      _
    $region27: #{tpu_custom_call.1} parent=1 // pred_check_branch
      %47 = sbr.rel (0) target = $region29
    $region28: #{tpu_custom_call.1} parent=1 // pred_region
      _
    $region29: #{tpu_custom_call.1} parent=1 // pred_fallthru
      _
    // Predicated region
    $region30: #{tpu_custom_call.1} parent=1 // pred_check
      _
    $region31: #{tpu_custom_call.1} parent=1 // pred_check_branch
      %49 = sbr.rel (0) target = $region33
    $region32: #{tpu_custom_call.1} parent=1 // pred_region
      %50 = dma.done [#allocation4], 128
    $region33: #{tpu_custom_call.1} parent=1 // pred_fallthru
      _
    // Predicated region
    $region34: #{tpu_custom_call.1} parent=1 // pred_check
      _
    $region35: #{tpu_custom_call.1} parent=1 // pred_check_branch
      %52 = sbr.rel (0) target = $region37
    $region36: #{tpu_custom_call.1} parent=1 // pred_region
      %53 = dma.done [#allocation7], 2048
    $region37: #{tpu_custom_call.1} parent=1 // pred_fallthru
      _
    %v54 = vld [vmem:[%s5] sm:$0x1]
    %v55 = vld [vmem:[%s5 + $0x1] sm:$0x1]
    %v56 = vld [vmem:[%s5 + $0x2] sm:$0x1]
    %v57 = vld [vmem:[#allocation3] sm:$0xff]
    %v58 = vld [vmem:[%s2] sm:$0xff]
    %v59 = vld [vmem:[%s2 + $0x8] sm:$0xf]
    %v60 = vld [vmem:[%s1] sm:$0xff]
    %v61 = vld [vmem:[%s3] sm:$0xf]
    %vm62 = vcmask 31744
    %v64 = vsel %vm62, %v60, 0
    %vm66 = vcmask 1043456
    %v68 = vsel %vm66, %v61, 0
    %70 = vmatprep.subr.mxu0 0.0
    %71 = vmatpush1.msra.mxu0 %v68
    %72 = vmatprep.subr.mxu0 0.0
    %73 = vmatpush1.msra.mxu0 0.0
    %74 = vmatprep.subr.mxu0 0.0
    %75 = vmatpush1.msra.mxu0 0.0
    %76 = vmatprep.subr.mxu0 0.0
    %77 = vmatpush1.msra.mxu0 0.0
    %78 = vmatprep.subr.mxu0 0.0
    %79 = vmatpush1.msra.mxu0 0.0
    %80 = vmatprep.subr.mxu0 0.0
    %81 = vmatpush1.msra.mxu0 0.0
    %82 = vmatprep.subr.mxu0 0.0
    %83 = vmatpush1.msra.mxu0 0.0
    %84 = vmatprep.subr.mxu0 0.0
    %85 = vmatpush1.msra.mxu0 0.0
    %86 = vmatprep.subr.mxu0 0.0
    %87 = vmatpush1.msra.mxu0 0.0
    %88 = vmatprep.subr.mxu0 0.0
    %89 = vmatpush1.msra.mxu0 0.0
    %90 = vmatprep.subr.mxu0 0.0
    %91 = vmatpush1.msra.mxu0 0.0
    %92 = vmatprep.subr.mxu0 0.0
    %93 = vmatpush1.msra.mxu0 0.0
    %94 = vmatprep.subr.mxu0 0.0
    %95 = vmatpush1.msra.mxu0 0.0
    %96 = vmatprep.subr.mxu0 0.0
    %97 = vmatpush1.msra.mxu0 0.0
    %98 = vmatprep.subr.mxu0 0.0
    %99 = vmatpush1.msra.mxu0 0.0
    %100 = vmatprep.subr.mxu0 0.0
    %101 = vmatpush1.msra.mxu0 0.0
    %102 = vmatprep.subr.mxu0 0.0
    %103 = vmatpush1.msra.mxu0 0.0
    %104 = vmatprep.subr.mxu0 0.0
    %105 = vmatpush1.msra.mxu0 0.0
    %106 = vmatprep.subr.mxu0 0.0
    %107 = vmatpush1.msra.mxu0 0.0
    %108 = vmatprep.subr.mxu0 0.0
    %109 = vmatpush1.msra.mxu0 0.0
    %110 = vmatprep.subr.mxu0 0.0
    %111 = vmatpush1.msra.mxu0 0.0
    %112 = vmatprep.subr.mxu0 0.0
    %113 = vmatpush1.msra.mxu0 0.0
    %114 = vmatprep.subr.mxu0 0.0
    %115 = vmatpush1.msra.mxu0 0.0
    %116 = vmatprep.subr.mxu0 0.0
    %117 = vmatpush1.msra.mxu0 0.0
    %118 = vmatprep.subr.mxu0 0.0
    %119 = vmatpush1.msra.mxu0 0.0
    %120 = vmatprep.subr.mxu0 0.0
    %121 = vmatpush1.msra.mxu0 0.0
    %122 = vmatprep.subr.mxu0 0.0
    %123 = vmatpush1.msra.mxu0 0.0
    %124 = vmatprep.subr.mxu0 0.0
    %125 = vmatpush1.msra.mxu0 0.0
    %126 = vmatprep.subr.mxu0 0.0
    %127 = vmatpush1.msra.mxu0 0.0
    %128 = vmatprep.subr.mxu0 0.0
    %129 = vmatpush1.msra.mxu0 0.0
    %130 = vmatprep.subr.mxu0 0.0
    %131 = vmatpush1.msra.mxu0 0.0
    %132 = vmatprep.subr.mxu0 0.0
    %133 = vmatpush1.msra.mxu0 0.0
    %134 = vmatprep.mubr.f32.mxu0 0.0
    %135 = vmatmul.mubr.f32.gmra.mrb[0].mxu0 %v64
    %v136 = vpop.f32.mrb[0].mxu0
    %v137 = vadd.f32 0.0, %v136
    %v138 = vpop.f32.mrb[0].mxu0
    %139 = vdwg.mxu0
    %vm140 = vcmask 97280
    %v142 = vsel %vm140, %v57, 0
    %v145 = vsel %vm66, %v59, 0
    %147 = vmatprep.subr.mxu0 0.0
    %148 = vmatpush1.msra.mxu0 %v58
    %149 = vmatprep.subr.mxu0 0.0
    %150 = vmatpush1.msra.mxu0 %v145
    %151 = vmatprep.subr.mxu0 0.0
    %152 = vmatpush1.msra.mxu0 0.0
    %153 = vmatprep.subr.mxu0 0.0
    %154 = vmatpush1.msra.mxu0 0.0
    %155 = vmatprep.subr.mxu0 0.0
    %156 = vmatpush1.msra.mxu0 0.0
    %157 = vmatprep.subr.mxu0 0.0
    %158 = vmatpush1.msra.mxu0 0.0
    %159 = vmatprep.subr.mxu0 0.0
    %160 = vmatpush1.msra.mxu0 0.0
    %161 = vmatprep.subr.mxu0 0.0
    %162 = vmatpush1.msra.mxu0 0.0
    %163 = vmatprep.subr.mxu0 0.0
    %164 = vmatpush1.msra.mxu0 0.0
    %165 = vmatprep.subr.mxu0 0.0
    %166 = vmatpush1.msra.mxu0 0.0
    %167 = vmatprep.subr.mxu0 0.0
    %168 = vmatpush1.msra.mxu0 0.0
    %169 = vmatprep.subr.mxu0 0.0
    %170 = vmatpush1.msra.mxu0 0.0
    %171 = vmatprep.subr.mxu0 0.0
    %172 = vmatpush1.msra.mxu0 0.0
    %173 = vmatprep.subr.mxu0 0.0
    %174 = vmatpush1.msra.mxu0 0.0
    %175 = vmatprep.subr.mxu0 0.0
    %176 = vmatpush1.msra.mxu0 0.0
    %177 = vmatprep.subr.mxu0 0.0
    %178 = vmatpush1.msra.mxu0 0.0
    %179 = vmatprep.subr.mxu0 0.0
    %180 = vmatpush1.msra.mxu0 0.0
    %181 = vmatprep.subr.mxu0 0.0
    %182 = vmatpush1.msra.mxu0 0.0
    %183 = vmatprep.subr.mxu0 0.0
    %184 = vmatpush1.msra.mxu0 0.0
    %185 = vmatprep.subr.mxu0 0.0
    %186 = vmatpush1.msra.mxu0 0.0
    %187 = vmatprep.subr.mxu0 0.0
    %188 = vmatpush1.msra.mxu0 0.0
    %189 = vmatprep.subr.mxu0 0.0
    %190 = vmatpush1.msra.mxu0 0.0
    %191 = vmatprep.subr.mxu0 0.0
    %192 = vmatpush1.msra.mxu0 0.0
    %193 = vmatprep.subr.mxu0 0.0
    %194 = vmatpush1.msra.mxu0 0.0
    %195 = vmatprep.subr.mxu0 0.0
    %196 = vmatpush1.msra.mxu0 0.0
    %197 = vmatprep.subr.mxu0 0.0
    %198 = vmatpush1.msra.mxu0 0.0
    %199 = vmatprep.subr.mxu0 0.0
    %200 = vmatpush1.msra.mxu0 0.0
    %201 = vmatprep.subr.mxu0 0.0
    %202 = vmatpush1.msra.mxu0 0.0
    %203 = vmatprep.subr.mxu0 0.0
    %204 = vmatpush1.msra.mxu0 0.0
    %205 = vmatprep.subr.mxu0 0.0
    %206 = vmatpush1.msra.mxu0 0.0
    %207 = vmatprep.subr.mxu0 0.0
    %208 = vmatpush1.msra.mxu0 0.0
    %209 = vmatprep.subr.mxu0 0.0
    %210 = vmatpush1.msra.mxu0 0.0
    %211 = vmatprep.mubr.f32.mxu0 0.0
    %212 = vmatmul.mubr.f32.gmra.mrb[0].mxu0 %v142
    %v213 = vpop.f32.mrb[0].mxu0
    %v214 = vadd.f32 %v137, %v213
    %v215 = vpop.f32.mrb[0].mxu0
    %216 = vdwg.mxu0
    %v217 = vlaneseq
    %v218 = vshrl.u32 %v217, 7
    %v219 = vsub.s32 0, %v218
    %v220 = vrot.slane %v54, %v219
    %v221 = vadd.f32 %v214, %v220
    %v222 = vmax.f32 %v221, 0.0
    %v223 = vld [vmem:[#allocation6] sm:$0xff]
    %v224 = vld [vmem:[#allocation6 + $0x8] sm:$0xff]
    %v225 = vld [vmem:[#allocation6 + $0x10] sm:$0xff]
    %v226 = vld [vmem:[#allocation6 + $0x18] sm:$0xff]
    %v227 = vld [vmem:[#allocation6 + $0x20] sm:$0xff]
    %v228 = vld [vmem:[#allocation6 + $0x28] sm:$0xff]
    %v229 = vld [vmem:[#allocation6 + $0x30] sm:$0xff]
    %v230 = vld [vmem:[#allocation6 + $0x38] sm:$0xff]
    %v231 = vld [vmem:[#allocation6 + $0x40] sm:$0xff]
    %v232 = vld [vmem:[#allocation6 + $0x48] sm:$0xff]
    %v233 = vld [vmem:[#allocation6 + $0x50] sm:$0xff]
    %v234 = vld [vmem:[#allocation6 + $0x58] sm:$0xff]
    %v235 = vld [vmem:[#allocation6 + $0x60] sm:$0xff]
    %v236 = vld [vmem:[#allocation6 + $0x68] sm:$0xff]
    %v237 = vld [vmem:[#allocation6 + $0x70] sm:$0xff]
    %v238 = vld [vmem:[#allocation6 + $0x78] sm:$0xff]
    %v239 = vlaneseq
    %v240 = vshrl.u32 %v239, 7
    %v241 = vsub.s32 0, %v240
    %v242 = vrot.slane %v55, %v241
    %243 = vmatprep.subr.mxu0 0.0
    %244 = vmatpush1.msra.mxu0 %v223
    %245 = vmatprep.subr.mxu0 0.0
    %246 = vmatpush1.msra.mxu0 %v224
    %247 = vmatprep.subr.mxu0 0.0
    %248 = vmatpush1.msra.mxu0 %v225
    %249 = vmatprep.subr.mxu0 0.0
    %250 = vmatpush1.msra.mxu0 %v226
    %251 = vmatprep.subr.mxu0 0.0
    %252 = vmatpush1.msra.mxu0 %v227
    %253 = vmatprep.subr.mxu0 0.0
    %254 = vmatpush1.msra.mxu0 %v228
    %255 = vmatprep.subr.mxu0 0.0
    %256 = vmatpush1.msra.mxu0 %v229
    %257 = vmatprep.subr.mxu0 0.0
    %258 = vmatpush1.msra.mxu0 %v230
    %259 = vmatprep.subr.mxu0 0.0
    %260 = vmatpush1.msra.mxu0 %v231
    %261 = vmatprep.subr.mxu0 0.0
    %262 = vmatpush1.msra.mxu0 %v232
    %263 = vmatprep.subr.mxu0 0.0
    %264 = vmatpush1.msra.mxu0 %v233
    %265 = vmatprep.subr.mxu0 0.0
    %266 = vmatpush1.msra.mxu0 %v234
    %267 = vmatprep.subr.mxu0 0.0
    %268 = vmatpush1.msra.mxu0 %v235
    %269 = vmatprep.subr.mxu0 0.0
    %270 = vmatpush1.msra.mxu0 %v236
    %271 = vmatprep.subr.mxu0 0.0
    %272 = vmatpush1.msra.mxu0 %v237
    %273 = vmatprep.subr.mxu0 0.0
    %274 = vmatpush1.msra.mxu0 %v238
    %275 = vmatprep.subr.mxu0 0.0
    %276 = vmatpush1.msra.mxu0 0.0
    %277 = vmatprep.subr.mxu0 0.0
    %278 = vmatpush1.msra.mxu0 0.0
    %279 = vmatprep.subr.mxu0 0.0
    %280 = vmatpush1.msra.mxu0 0.0
    %281 = vmatprep.subr.mxu0 0.0
    %282 = vmatpush1.msra.mxu0 0.0
    %283 = vmatprep.subr.mxu0 0.0
    %284 = vmatpush1.msra.mxu0 0.0
    %285 = vmatprep.subr.mxu0 0.0
    %286 = vmatpush1.msra.mxu0 0.0
    %287 = vmatprep.subr.mxu0 0.0
    %288 = vmatpush1.msra.mxu0 0.0
    %289 = vmatprep.subr.mxu0 0.0
    %290 = vmatpush1.msra.mxu0 0.0
    %291 = vmatprep.subr.mxu0 0.0
    %292 = vmatpush1.msra.mxu0 0.0
    %293 = vmatprep.subr.mxu0 0.0
    %294 = vmatpush1.msra.mxu0 0.0
    %295 = vmatprep.subr.mxu0 0.0
    %296 = vmatpush1.msra.mxu0 0.0
    %297 = vmatprep.subr.mxu0 0.0
    %298 = vmatpush1.msra.mxu0 0.0
    %299 = vmatprep.subr.mxu0 0.0
    %300 = vmatpush1.msra.mxu0 0.0
    %301 = vmatprep.subr.mxu0 0.0
    %302 = vmatpush1.msra.mxu0 0.0
    %303 = vmatprep.subr.mxu0 0.0
    %304 = vmatpush1.msra.mxu0 0.0
    %305 = vmatprep.subr.mxu0 0.0
    %306 = vmatpush1.msra.mxu0 0.0
    %307 = vmatprep.mubr.f32.mxu0 0.0
    %308 = vmatmul.mubr.f32.gmra.mrb[0].mxu0 %v222
    %v309 = vpop.f32.mrb[0].mxu0
    %v310 = vadd.f32 %v242, %v309
    %v311 = vpop.f32.mrb[0].mxu0
    %312 = vdwg.mxu0
    %v313 = vmax.f32 %v310, 0.0
    %s314 = sld [smem:[#allocation2]]
    %v315 = vstv %s314
    %316 = vmatprep.subr.mxu0 0.0
    %317 = vmatpush1.xpose.msra.mxu0 %v313
    %318 = vmatprep.subr.mxu0 0.0
    %319 = vmatpush1.xpose.msra.mxu0 0.0
    %320 = vmatprep.subr.mxu0 0.0
    %321 = vmatpush1.xpose.msra.mxu0 0.0
    %322 = vmatprep.subr.mxu0 0.0
    %323 = vmatpush1.xpose.msra.mxu0 0.0
    %324 = vmatprep.subr.mxu0 0.0
    %325 = vmatpush1.xpose.msra.mxu0 0.0
    %326 = vmatprep.subr.mxu0 0.0
    %327 = vmatpush1.xpose.msra.mxu0 0.0
    %328 = vmatprep.subr.mxu0 0.0
    %329 = vmatpush1.xpose.msra.mxu0 0.0
    %330 = vmatprep.subr.mxu0 0.0
    %331 = vmatpush1.xpose.msra.mxu0 0.0
    %332 = vmatprep.subr.mxu0 0.0
    %333 = vmatpush1.xpose.msra.mxu0 0.0
    %334 = vmatprep.subr.mxu0 0.0
    %335 = vmatpush1.xpose.msra.mxu0 0.0
    %336 = vmatprep.subr.mxu0 0.0
    %337 = vmatpush1.xpose.msra.mxu0 0.0
    %338 = vmatprep.subr.mxu0 0.0
    %339 = vmatpush1.xpose.msra.mxu0 0.0
    %340 = vmatprep.subr.mxu0 0.0
    %341 = vmatpush1.xpose.msra.mxu0 0.0
    %342 = vmatprep.subr.mxu0 0.0
    %343 = vmatpush1.xpose.msra.mxu0 0.0
    %344 = vmatprep.subr.mxu0 0.0
    %345 = vmatpush1.xpose.msra.mxu0 0.0
    %346 = vmatprep.subr.mxu0 0.0
    %347 = vmatpush1.xpose.msra.mxu0 0.0
    %348 = vmatprep.subr.mxu0 0.0
    %349 = vmatpush1.xpose.msra.mxu0 0.0
    %350 = vmatprep.subr.mxu0 0.0
    %351 = vmatpush1.xpose.msra.mxu0 0.0
    %352 = vmatprep.subr.mxu0 0.0
    %353 = vmatpush1.xpose.msra.mxu0 0.0
    %354 = vmatprep.subr.mxu0 0.0
    %355 = vmatpush1.xpose.msra.mxu0 0.0
    %356 = vmatprep.subr.mxu0 0.0
    %357 = vmatpush1.xpose.msra.mxu0 0.0
    %358 = vmatprep.subr.mxu0 0.0
    %359 = vmatpush1.xpose.msra.mxu0 0.0
    %360 = vmatprep.subr.mxu0 0.0
    %361 = vmatpush1.xpose.msra.mxu0 0.0
    %362 = vmatprep.subr.mxu0 0.0
    %363 = vmatpush1.xpose.msra.mxu0 0.0
    %364 = vmatprep.subr.mxu0 0.0
    %365 = vmatpush1.xpose.msra.mxu0 0.0
    %366 = vmatprep.subr.mxu0 0.0
    %367 = vmatpush1.xpose.msra.mxu0 0.0
    %368 = vmatprep.subr.mxu0 0.0
    %369 = vmatpush1.xpose.msra.mxu0 0.0
    %370 = vmatprep.subr.mxu0 0.0
    %371 = vmatpush1.xpose.msra.mxu0 0.0
    %372 = vmatprep.subr.mxu0 0.0
    %373 = vmatpush1.xpose.msra.mxu0 0.0
    %374 = vmatprep.subr.mxu0 0.0
    %375 = vmatpush1.xpose.msra.mxu0 0.0
    %376 = vmatprep.subr.mxu0 0.0
    %377 = vmatpush1.xpose.msra.mxu0 0.0
    %378 = vmatprep.subr.mxu0 0.0
    %379 = vmatpush1.xpose.msra.mxu0 0.0
    %380 = vmatprep.mubr.f32.mxu0 0.0
    %381 = vmatmul.mubr.f32.gmra.mrb[0].mxu0 %v56
    %v382 = vpop.f32.mrb[0].mxu0
    %v383 = vadd.f32 %v315, %v382
    %v384 = vpop.f32.mrb[0].mxu0
    %385 = vdwg.mxu0
    %vm386 = vcmask 57344
    %387 = vst.msk [vmem:[#allocation8] sm:$0x1] %vm386, %v383
    // Predicated region
    $region38: #{tpu_custom_call.1} parent=1 // pred_check
      _
    $region39: #{tpu_custom_call.1} parent=1 // pred_check_branch
      %389 = sbr.rel (0) target = $region41
    $region40: #{tpu_custom_call.1} parent=1 // pred_region
      %s391 = ssub.s32 16, 16
      %392 = vsyncadd [#allocation5], %s391
      %s394 = sshll.u32 [#allocation8], 4
      %s395 = int_to_ptr.vmem [resolvable:$true] %s394
      %397 = dma.vmem_to_hbm [thread:$0]  %s395, 16, %s7, [#allocation5]
    $region41: #{tpu_custom_call.1} parent=1 // pred_fallthru
      _
    // Predicated region
    $region42: #{tpu_custom_call.1} parent=1 // pred_check
      _
    $region43: #{tpu_custom_call.1} parent=1 // pred_check_branch
      %399 = sbr.rel (0) target = $region45
    $region44: #{tpu_custom_call.1} parent=1 // pred_region
      %400 = dma.done [#allocation5], 16
    $region45: #{tpu_custom_call.1} parent=1 // pred_fallthru
      _
    %401 = vsyncpa [#allocation4], 1
    %402 = vsyncpa [#allocation7], 1
    %403 = vsyncpa [#allocation5], 1

</llo_original>
